<compile_context>
chip_gen: v7x
topology: tpu7x:2x2x1
jax: 0.10.0
libtpu: 0.0.40
codegen_flags: <defaults>
</compile_context>

<pallas_src>
import jax
import jax.numpy as jnp
from jax import lax
from jax.experimental import pallas as pl
from jax.experimental.pallas import tpu as pltpu


def domain_branch_kernel(a_ref, x_ref, w1_ref, w2_ref, w3_ref, x_out_ref, a_out_ref):
    f32 = jnp.float32
    bf16 = jnp.bfloat16

    a = a_ref[...].astype(f32)
    n = a.shape[0]

    # ---- graph_norm(A, self_loop=True, symmetric=True): D^-1/2 (A+I) D^-1/2 ----
    rows = lax.broadcasted_iota(jnp.int32, (n, n), 0)
    cols = lax.broadcasted_iota(jnp.int32, (n, n), 1)
    eye = (rows == cols).astype(f32)

    a_hat = a + eye                                       # A + I
    deg = jnp.sum(a_hat, axis=1, keepdims=True)           # (N, 1) row degrees
    deg = jnp.maximum(deg, 1e-12)                         # guard rsqrt against <= 0 rows
    d_inv_sqrt = lax.rsqrt(deg)                           # (N, 1), EUP

    # (1, N) copy of d^-1/2 without an XLU (N,1)->(1,N) transpose:
    # mask to the diagonal and reduce over sublanes.
    d_row = jnp.sum(eye * d_inv_sqrt, axis=0, keepdims=True)   # (1, N)

    # O(N^2) row scale + column scale on the VPU (no N^3 diag matmul).
    a_norm = (a_hat * d_inv_sqrt) * d_row                 # f32, written to a_out
    a_prop = a_norm.astype(bf16)                          # bf16 MXU operand

    # ---- GCN: everything stays resident in VMEM / vregs ----
    x = x_ref[...].astype(bf16)
    w1 = w1_ref[...].astype(bf16)
    w2 = w2_ref[...].astype(bf16)
    w3 = w3_ref[...].astype(bf16)

    def mm(p, q):  # bf16 operands, f32 accumulation on the MXU
        return jnp.dot(p, q, preferred_element_type=f32)

    # Reassociated: A_norm @ (H @ W).  ReLU is applied after both matmuls, so
    # this is mathematically identical to (A_norm @ H) @ W, but the expensive
    # N^2-width propagate runs at the narrower output feature width.
    h = jnp.maximum(mm(a_prop, mm(x, w1).astype(bf16)), 0.0).astype(bf16)
    h = jnp.maximum(mm(a_prop, mm(h, w2).astype(bf16)), 0.0).astype(bf16)

    h2_dim, out_dim = w3_ref.shape
    if out_dim <= h2_dim:
        y = mm(a_prop, mm(h, w3).astype(bf16))            # propagate at width out_dim
    else:
        y = mm(mm(a_prop, h).astype(bf16), w3)            # propagate at width h2

    x_out_ref[...] = y.astype(x_out_ref.dtype)
    a_out_ref[...] = a_norm.astype(a_out_ref.dtype)


def domain_branch_forward(x, a, w1, w2, w3):
    """Fused DomainBranch forward. Weights are stored (in_features, out_features)."""
    n, in_dim = x.shape
    h1 = w1.shape[1]
    h2 = w2.shape[1]
    out_dim = w3.shape[1]

    # Advisory cost for XLA scheduling (no N^3 term any more; real dtype sizes).
    prop3_w = out_dim if out_dim <= h2 else h2
    flops = (
        5 * n * n                                         # graph_norm elementwise
        + 2 * n * in_dim * h1 + 2 * n * n * h1            # layer 1 (reassociated)
        + 2 * n * h1 * h2 + 2 * n * n * h2                # layer 2 (reassociated)
        + 2 * n * h2 * out_dim + 2 * n * n * prop3_w      # layer 3
    )
    bytes_accessed = (
        a.dtype.itemsize * n * n                          # A in
        + x.dtype.itemsize * n * in_dim                   # X in
        + w1.dtype.itemsize * in_dim * h1
        + w2.dtype.itemsize * h1 * h2
        + w3.dtype.itemsize * h2 * out_dim
        + x.dtype.itemsize * n * out_dim                  # X out
        + a.dtype.itemsize * n * n                        # A_norm out
    )

    # VMEM working set: A(f32) + a_norm(f32) + eye/temp(f32) + a_norm(bf16)
    # + feature buffers + weights + output, with headroom.
    feat = max(in_dim, h1, h2, out_dim)
    needed = (
        3 * 4 * n * n + 2 * n * n
        + 4 * 4 * n * feat
        + 4 * (in_dim * h1 + h1 * h2 + h2 * out_dim)
        + 4 * n * out_dim
    )
    vmem_limit = int(min(max(4 * needed, 16 << 20), 64 << 20))

    # TODO(synk): for production N where the fully-resident working set exceeds
    # VMEM (especially v7x's 64 MiB), switch to a row-tiled grid over A
    # (graph_norm + propagate per (tm, N) tile, H in VMEM scratch, a_norm
    # re-read per layer) and mark the row axis "parallel" to use both v7x TCs.
    x_out, a_out = pl.pallas_call(
        domain_branch_kernel,
        out_shape=(
            jax.ShapeDtypeStruct((n, out_dim), x.dtype),
            jax.ShapeDtypeStruct((n, n), a.dtype),
        ),
        # No grid: whole arrays live in VMEM, single-buffered (no wasted
        # double-buffering of the two N^2 blocks).
        compiler_params=pltpu.CompilerParams(vmem_limit_bytes=vmem_limit),
        cost_estimate=pl.CostEstimate(
            flops=int(flops),
            transcendentals=int(n),
            bytes_accessed=int(bytes_accessed),
        ),
    )(a, x, w1, w2, w3)
    return x_out, a_out


def init_params(key, in_dim, out_dim, dtype=jnp.float32):
    """Torch-Linear-like (bias=False) init; weights stored as (in, out) == torch W.T."""
    h1, h2 = in_dim // 2, in_dim // 4
    k1, k2, k3 = jax.random.split(key, 3)
    b1 = 1.0 / jnp.sqrt(in_dim)
    b2 = 1.0 / jnp.sqrt(h1)
    b3 = 1.0 / jnp.sqrt(h2)
    w1 = jax.random.uniform(k1, (in_dim, h1), dtype, -b1, b1)
    w2 = jax.random.uniform(k2, (h1, h2), dtype, -b2, b2)
    w3 = jax.random.uniform(k3, (h2, out_dim), dtype, -b3, b3)
    return w1, w2, w3


if __name__ == "__main__":
    key = jax.random.PRNGKey(0)
    n_nodes, in_dim, out_dim = 8, 32, 8

    ka, kx, kp = jax.random.split(key, 3)
    a = jax.random.uniform(ka, (n_nodes, n_nodes), jnp.float32)   # non-negative adjacency
    x = jax.random.normal(kx, (n_nodes, in_dim), jnp.float32)
    w1, w2, w3 = init_params(kp, in_dim, out_dim)

    x_out, a_out = domain_branch_forward(x, a, w1, w2, w3)
    jax.block_until_ready((x_out, a_out))

    # ---- Pure-JAX f32 reference ----
    def mm(p, q):
        return jnp.dot(p, q, precision=lax.Precision.HIGHEST)

    a_hat = a + jnp.eye(n_nodes, dtype=jnp.float32)
    deg = a_hat.sum(axis=1)
    d = jnp.diag(1.0 / jnp.sqrt(deg))
    a_norm_ref = mm(mm(d, a_hat), d)
    h = jnp.maximum(mm(mm(a_norm_ref, x), w1), 0.0)
    h = jnp.maximum(mm(mm(a_norm_ref, h), w2), 0.0)
    y_ref = mm(mm(a_norm_ref, h), w3)

    assert x_out.shape == (n_nodes, out_dim) and a_out.shape == (n_nodes, n_nodes)
    # a_norm is computed in f32 inside the kernel -> tight tolerance.
    assert jnp.allclose(a_out, a_norm_ref, atol=1e-5, rtol=1e-5)
    # GCN propagates use bf16 MXU operands (f32 accumulate) -> bf16-level tolerance.
    assert jnp.allclose(x_out, y_ref, atol=5e-2, rtol=5e-2)

    print("KERNEL_OK")
</pallas_src>

<mosaic_0001>
module attributes {stable_mosaic.version = 11 : i64} {
  func.func @domain_branch_kernel(%arg0: memref<8x8xf32, #tpu.memory_space<vmem>>, %arg1: memref<8x32xf32, #tpu.memory_space<vmem>>, %arg2: memref<32x16xf32, #tpu.memory_space<vmem>>, %arg3: memref<16x8xf32, #tpu.memory_space<vmem>>, %arg4: memref<8x8xf32, #tpu.memory_space<vmem>>, %arg5: memref<8x8xf32, #tpu.memory_space<vmem>>, %arg6: memref<8x8xf32, #tpu.memory_space<vmem>>) attributes {dimension_semantics = [], scalar_prefetch = 0 : i64, scratch_operands = 0 : i64, tpu.core_type = #tpu.core_type<tc>} {
    %c0 = arith.constant 0 : index
    %c0_0 = arith.constant 0 : index
    %0 = vector.load %arg0[%c0, %c0_0] : memref<8x8xf32, #tpu.memory_space<vmem>>, vector<8x8xf32>
    %1 = tpu.iota {dimensions = array<i32: 0>} : vector<8x8xi32>
    %2 = tpu.iota {dimensions = array<i32: 1>} : vector<8x8xi32>
    %3 = arith.cmpi eq, %1, %2 : vector<8x8xi32>
    %4 = arith.extui %3 : vector<8x8xi1> to vector<8x8xi32>
    %5 = arith.sitofp %4 : vector<8x8xi32> to vector<8x8xf32>
    %6 = arith.addf %0, %5 : vector<8x8xf32>
    %cst = arith.constant dense<0.000000e+00> : vector<8xf32>
    %7 = vector.multi_reduction <add>, %6, %cst [1] : vector<8x8xf32> to vector<8xf32>
    %8 = vector.shape_cast %7 : vector<8xf32> to vector<8x1xf32>
    %cst_1 = arith.constant 9.99999996E-13 : f32
    %9 = vector.broadcast %cst_1 : f32 to vector<8x1xf32>
    %10 = arith.maximumf %8, %9 : vector<8x1xf32>
    %11 = math.rsqrt %10 : vector<8x1xf32>
    %12 = vector.broadcast %11 : vector<8x1xf32> to vector<8x8xf32>
    %13 = arith.mulf %5, %12 : vector<8x8xf32>
    %cst_2 = arith.constant dense<0.000000e+00> : vector<8xf32>
    %14 = vector.multi_reduction <add>, %13, %cst_2 [0] : vector<8x8xf32> to vector<8xf32>
    %15 = vector.shape_cast %14 : vector<8xf32> to vector<1x8xf32>
    %16 = vector.broadcast %11 : vector<8x1xf32> to vector<8x8xf32>
    %17 = arith.mulf %6, %16 : vector<8x8xf32>
    %18 = vector.broadcast %15 : vector<1x8xf32> to vector<8x8xf32>
    %19 = arith.mulf %17, %18 : vector<8x8xf32>
    %20 = arith.truncf %19 : vector<8x8xf32> to vector<8x8xbf16>
    %c0_3 = arith.constant 0 : index
    %c0_4 = arith.constant 0 : index
    %21 = vector.load %arg1[%c0_3, %c0_4] : memref<8x32xf32, #tpu.memory_space<vmem>>, vector<8x32xf32>
    %22 = arith.truncf %21 : vector<8x32xf32> to vector<8x32xbf16>
    %c0_5 = arith.constant 0 : index
    %c0_6 = arith.constant 0 : index
    %23 = vector.load %arg2[%c0_5, %c0_6] : memref<32x16xf32, #tpu.memory_space<vmem>>, vector<32x16xf32>
    %24 = arith.truncf %23 : vector<32x16xf32> to vector<32x16xbf16>
    %c0_7 = arith.constant 0 : index
    %c0_8 = arith.constant 0 : index
    %25 = vector.load %arg3[%c0_7, %c0_8] : memref<16x8xf32, #tpu.memory_space<vmem>>, vector<16x8xf32>
    %26 = arith.truncf %25 : vector<16x8xf32> to vector<16x8xbf16>
    %c0_9 = arith.constant 0 : index
    %c0_10 = arith.constant 0 : index
    %27 = vector.load %arg4[%c0_9, %c0_10] : memref<8x8xf32, #tpu.memory_space<vmem>>, vector<8x8xf32>
    %28 = arith.truncf %27 : vector<8x8xf32> to vector<8x8xbf16>
    %cst_11 = arith.constant dense<0.000000e+00> : vector<8x16xf32>
    %29 = tpu.matmul %22, %24, %cst_11 {dimension_numbers = #tpu.dot_dimension_numbers<[1], [0], [0], [1], [0, 0, 1, 1], [], []>} : vector<8x32xbf16>, vector<32x16xbf16>, vector<8x16xf32> -> vector<8x16xf32>
    %30 = arith.truncf %29 : vector<8x16xf32> to vector<8x16xbf16>
    %cst_12 = arith.constant dense<0.000000e+00> : vector<8x16xf32>
    %31 = tpu.matmul %20, %30, %cst_12 {dimension_numbers = #tpu.dot_dimension_numbers<[1], [0], [0], [1], [0, 0, 1, 1], [], []>} : vector<8x8xbf16>, vector<8x16xbf16>, vector<8x16xf32> -> vector<8x16xf32>
    %cst_13 = arith.constant 0.000000e+00 : f32
    %32 = vector.broadcast %cst_13 : f32 to vector<8x16xf32>
    %33 = arith.maximumf %31, %32 : vector<8x16xf32>
    %34 = arith.truncf %33 : vector<8x16xf32> to vector<8x16xbf16>
    %cst_14 = arith.constant dense<0.000000e+00> : vector<8x8xf32>
    %35 = tpu.matmul %34, %26, %cst_14 {dimension_numbers = #tpu.dot_dimension_numbers<[1], [0], [0], [1], [0, 0, 1, 1], [], []>} : vector<8x16xbf16>, vector<16x8xbf16>, vector<8x8xf32> -> vector<8x8xf32>
    %36 = arith.truncf %35 : vector<8x8xf32> to vector<8x8xbf16>
    %cst_15 = arith.constant dense<0.000000e+00> : vector<8x8xf32>
    %37 = tpu.matmul %20, %36, %cst_15 {dimension_numbers = #tpu.dot_dimension_numbers<[1], [0], [0], [1], [0, 0, 1, 1], [], []>} : vector<8x8xbf16>, vector<8x8xbf16>, vector<8x8xf32> -> vector<8x8xf32>
    %cst_16 = arith.constant 0.000000e+00 : f32
    %38 = vector.broadcast %cst_16 : f32 to vector<8x8xf32>
    %39 = arith.maximumf %37, %38 : vector<8x8xf32>
    %40 = arith.truncf %39 : vector<8x8xf32> to vector<8x8xbf16>
    %cst_17 = arith.constant dense<0.000000e+00> : vector<8x8xf32>
    %41 = tpu.matmul %40, %28, %cst_17 {dimension_numbers = #tpu.dot_dimension_numbers<[1], [0], [0], [1], [0, 0, 1, 1], [], []>} : vector<8x8xbf16>, vector<8x8xbf16>, vector<8x8xf32> -> vector<8x8xf32>
    %42 = arith.truncf %41 : vector<8x8xf32> to vector<8x8xbf16>
    %cst_18 = arith.constant dense<0.000000e+00> : vector<8x8xf32>
    %43 = tpu.matmul %20, %42, %cst_18 {dimension_numbers = #tpu.dot_dimension_numbers<[1], [0], [0], [1], [0, 0, 1, 1], [], []>} : vector<8x8xbf16>, vector<8x8xbf16>, vector<8x8xf32> -> vector<8x8xf32>
    %c0_19 = arith.constant 0 : index
    %c0_20 = arith.constant 0 : index
    %44 = vector.load %arg5[%c0_19, %c0_20] : memref<8x8xf32, #tpu.memory_space<vmem>>, vector<8x8xf32>
    tpu.vector_store %arg5[%c0_19, %c0_20], %43 {strides = array<i32>} : memref<8x8xf32, #tpu.memory_space<vmem>>, vector<8x8xf32>,
    %c0_21 = arith.constant 0 : index
    %c0_22 = arith.constant 0 : index
    %45 = vector.load %arg6[%c0_21, %c0_22] : memref<8x8xf32, #tpu.memory_space<vmem>>, vector<8x8xf32>
    tpu.vector_store %arg6[%c0_21, %c0_22], %19 {strides = array<i32>} : memref<8x8xf32, #tpu.memory_space<vmem>>, vector<8x8xf32>,
    return
  }
}

</mosaic_0001>

<llo_original>
// kernel: tpu_custom_call.1
$region0: #{tpu_custom_call.1}
  #allocation0 [shape = 'u32[]', space=smem, size = 0x4, offset = 0x4, fixed_abs, tag = 'smem constant byte address 0x4 - core index']
  #allocation1 [shape = 'u32[144,128]{1,0:T(1,128)}', space=vmem, size = 0x12000, scoped, tag = 'internal scratch']
  %s0 = inlined_call_operand.vmem [shape: f32[8,8], index: 0, kind: input, shape index: {}]
  %s1 = inlined_call_operand.vmem [shape: f32[8,32], index: 1, kind: input, shape index: {}]
  %s2 = inlined_call_operand.vmem [shape: f32[32,16], index: 2, kind: input, shape index: {}]
  %s3 = inlined_call_operand.vmem [shape: f32[16,8], index: 3, kind: input, shape index: {}]
  %s4 = inlined_call_operand.vmem [shape: f32[8,8], index: 4, kind: input, shape index: {}]
  %s5 = inlined_call_operand.hbm [shape: f32[8,8], index: 5, kind: output, shape index: {0}]
  %s6 = inlined_call_operand.hbm [shape: f32[8,8], index: 6, kind: output, shape index: {1}]
  %7 = xla_tuple %s5, %s6
  %s8 = sld [smem:[#allocation0]]
  $region38: #{tpu_custom_call.1} parent=0
    _
  %s10 = ssub.s32 1, %s8
  %s11 = scalar_select 0, %s10, %s8
  $region1: #{tpu_custom_call.1} parent=0
    #allocation2 [shape = 'u8[4096]{0}', space=vmem, size = 0x1000, scoped, tag = 'output window, operand 0, single buffered']
    #allocation3 [shape = 's32[1]{0}', space=sflag, size = 0x4, scoped, tag = 'scoped memory for tpu_custom_call.1']
    #allocation4 [shape = 'u8[4096]{0}', space=vmem, size = 0x1000, scoped, tag = 'output window, operand 1, single buffered']
    #allocation5 [shape = 's32[1]{0}', space=sflag, size = 0x4, scoped, tag = 'scoped memory for tpu_custom_call.1']
    %12 = vsyncpa [#allocation3], 0
    %13 = vsyncpa [#allocation5], 0
    // Predicated region
    $region2: #{tpu_custom_call.1} parent=1 // pred_check
      _
    $region3: #{tpu_custom_call.1} parent=1 // pred_check_branch
      %15 = sbr.rel (0) target = $region5
    $region4: #{tpu_custom_call.1} parent=1 // pred_region
      _
    $region5: #{tpu_custom_call.1} parent=1 // pred_fallthru
      _
    // Predicated region
    $region6: #{tpu_custom_call.1} parent=1 // pred_check
      _
    $region7: #{tpu_custom_call.1} parent=1 // pred_check_branch
      %17 = sbr.rel (0) target = $region9
    $region8: #{tpu_custom_call.1} parent=1 // pred_region
      _
    $region9: #{tpu_custom_call.1} parent=1 // pred_fallthru
      _
    // Predicated region
    $region10: #{tpu_custom_call.1} parent=1 // pred_check
      _
    $region11: #{tpu_custom_call.1} parent=1 // pred_check_branch
      %19 = sbr.rel (0) target = $region13
    $region12: #{tpu_custom_call.1} parent=1 // pred_region
      _
    $region13: #{tpu_custom_call.1} parent=1 // pred_fallthru
      _
    // Predicated region
    $region14: #{tpu_custom_call.1} parent=1 // pred_check
      _
    $region15: #{tpu_custom_call.1} parent=1 // pred_check_branch
      %21 = sbr.rel (0) target = $region17
    $region16: #{tpu_custom_call.1} parent=1 // pred_region
      _
    $region17: #{tpu_custom_call.1} parent=1 // pred_fallthru
      _
    // Predicated region
    $region18: #{tpu_custom_call.1} parent=1 // pred_check
      _
    $region19: #{tpu_custom_call.1} parent=1 // pred_check_branch
      %23 = sbr.rel (0) target = $region21
    $region20: #{tpu_custom_call.1} parent=1 // pred_region
      _
    $region21: #{tpu_custom_call.1} parent=1 // pred_fallthru
      _
    %v25 = vld [vmem:[%s0] sm:$0xff]
    %v26 = vlaneseq
    %v27 = vshrl.u32 %v26, 7
    %v28 = vlaneseq
    %v29 = vand.u32 %v28, 127
    %vm30 = vcmp.eq.s32.totalorder %v27, %v29
    %v31 = vsel %vm30, 1, 0
    %v32 = vcvt.s32.f32 %v31
    %v33 = vadd.f32 %v25, %v32
    %vm34 = vcmask 64512
    %v35 = vsel %vm34, %v33, 0.0
    %36 = vadd.xlane.f32.xlu0 %v35
    %v37 = vpop.xlane.xlu0 %36
    %v38 = vmax.f32 %v37, 1e-12
    %v39 = vrsqrt.pop %v38
    %v40 = vmul.f32 %v32, %v39
    %v41 = vsel %vm34, %v40, 0.0
    %v42 = vrot.slane %v41, 4
    %v43 = vadd.f32 %v41, %v42
    %v44 = vrot.slane %v43, 2
    %v45 = vadd.f32 %v43, %v44
    %v46 = vrot.slane %v45, 1
    %v47 = vadd.f32 %v45, %v46
    %v48 = vmul.f32 %v33, %v39
    %v49 = vmul.f32 %v48, %v47
    %v50 = vpack.c.bf16 %v49, %v49
    %v51 = vld [vmem:[%s1] sm:$0xff]
    %v52 = vpack.c.bf16 %v51, %v51
    %v53 = vld [vmem:[%s2] sm:$0xff]
    %v54 = vld [vmem:[%s2 + $0x8] sm:$0xff]
    %v55 = vld [vmem:[%s2 + $0x10] sm:$0xff]
    %v56 = vld [vmem:[%s2 + $0x18] sm:$0xff]
    %v57 = vpack.c.bf16 %v54, %v53
    %v58 = vpack.c.bf16 %v56, %v55
    %v59 = vld [vmem:[%s3] sm:$0xff]
    %v60 = vld [vmem:[%s3 + $0x8] sm:$0xff]
    %v61 = vpack.c.bf16 %v60, %v59
    %v62 = vld [vmem:[%s4] sm:$0xff]
    %v63 = vpack.c.bf16 %v62, %v62
    %vm64 = vcmask 261120
    %v66 = vsel %vm64, %v52, 0
    %68 = vmatprep.subr.bf16.mxu0 0
    %69 = vmatpush1.bf16.msra.mxu0 %v57
    %70 = vmatprep.subr.bf16.mxu0 0
    %71 = vmatpush1.bf16.msra.mxu0 %v58
    %72 = vmatprep.subr.bf16.mxu0 0
    %73 = vmatpush1.bf16.msra.mxu0 0
    %74 = vmatprep.subr.bf16.mxu0 0
    %75 = vmatpush1.bf16.msra.mxu0 0
    %76 = vmatprep.subr.bf16.mxu0 0
    %77 = vmatpush1.bf16.msra.mxu0 0
    %78 = vmatprep.subr.bf16.mxu0 0
    %79 = vmatpush1.bf16.msra.mxu0 0
    %80 = vmatprep.subr.bf16.mxu0 0
    %81 = vmatpush1.bf16.msra.mxu0 0
    %82 = vmatprep.subr.bf16.mxu0 0
    %83 = vmatpush1.bf16.msra.mxu0 0
    %84 = vmatprep.subr.bf16.mxu0 0
    %85 = vmatpush1.bf16.msra.mxu0 0
    %86 = vmatprep.subr.bf16.mxu0 0
    %87 = vmatpush1.bf16.msra.mxu0 0
    %88 = vmatprep.subr.bf16.mxu0 0
    %89 = vmatpush1.bf16.msra.mxu0 0
    %90 = vmatprep.subr.bf16.mxu0 0
    %91 = vmatpush1.bf16.msra.mxu0 0
    %92 = vmatprep.subr.bf16.mxu0 0
    %93 = vmatpush1.bf16.msra.mxu0 0
    %94 = vmatprep.subr.bf16.mxu0 0
    %95 = vmatpush1.bf16.msra.mxu0 0
    %96 = vmatprep.subr.bf16.mxu0 0
    %97 = vmatpush1.bf16.msra.mxu0 0
    %98 = vmatprep.subr.bf16.mxu0 0
    %99 = vmatpush1.bf16.msra.mxu0 0
    %100 = vmatprep.mubr.bf16.mxu0 0
    %101 = vmatmul.mubr.bf16.gmra.mrb[0].mxu0 %v66
    %v102 = vpop.f32.mrb[0].mxu0
    %v103 = vadd.f32 0.0, %v102
    %v104 = vpop.f32.mrb[0].mxu0
    %v105 = vpop.f32.mrb[0].mxu0
    %v106 = vpop.f32.mrb[0].mxu0
    %107 = vdwg.mxu0
    %v108 = vpack.c.bf16 %v103, %v103
    %v110 = vsel %vm34, %v50, 0
    %vm112 = vcmask 1043456
    %v114 = vsel %vm112, %v108, 0
    %116 = vmatprep.subr.bf16.mxu0 0
    %117 = vmatpush1.bf16.msra.mxu0 %v114
    %118 = vmatprep.subr.bf16.mxu0 0
    %119 = vmatpush1.bf16.msra.mxu0 0
    %120 = vmatprep.subr.bf16.mxu0 0
    %121 = vmatpush1.bf16.msra.mxu0 0
    %122 = vmatprep.subr.bf16.mxu0 0
    %123 = vmatpush1.bf16.msra.mxu0 0
    %124 = vmatprep.subr.bf16.mxu0 0
    %125 = vmatpush1.bf16.msra.mxu0 0
    %126 = vmatprep.subr.bf16.mxu0 0
    %127 = vmatpush1.bf16.msra.mxu0 0
    %128 = vmatprep.subr.bf16.mxu0 0
    %129 = vmatpush1.bf16.msra.mxu0 0
    %130 = vmatprep.subr.bf16.mxu0 0
    %131 = vmatpush1.bf16.msra.mxu0 0
    %132 = vmatprep.subr.bf16.mxu0 0
    %133 = vmatpush1.bf16.msra.mxu0 0
    %134 = vmatprep.subr.bf16.mxu0 0
    %135 = vmatpush1.bf16.msra.mxu0 0
    %136 = vmatprep.subr.bf16.mxu0 0
    %137 = vmatpush1.bf16.msra.mxu0 0
    %138 = vmatprep.subr.bf16.mxu0 0
    %139 = vmatpush1.bf16.msra.mxu0 0
    %140 = vmatprep.subr.bf16.mxu0 0
    %141 = vmatpush1.bf16.msra.mxu0 0
    %142 = vmatprep.subr.bf16.mxu0 0
    %143 = vmatpush1.bf16.msra.mxu0 0
    %144 = vmatprep.subr.bf16.mxu0 0
    %145 = vmatpush1.bf16.msra.mxu0 0
    %146 = vmatprep.subr.bf16.mxu0 0
    %147 = vmatpush1.bf16.msra.mxu0 0
    %148 = vmatprep.mubr.bf16.mxu0 0
    %149 = vmatmul.mubr.bf16.gmra.mrb[0].mxu0 %v110
    %v150 = vpop.f32.mrb[0].mxu0
    %v151 = vadd.f32 0.0, %v150
    %v152 = vpop.f32.mrb[0].mxu0
    %v153 = vpop.f32.mrb[0].mxu0
    %v154 = vpop.f32.mrb[0].mxu0
    %155 = vdwg.mxu0
    %v156 = vmax.f32 %v151, 0.0
    %v157 = vpack.c.bf16 %v156, %v156
    %vm158 = vcmask 130048
    %v160 = vsel %vm158, %v157, 0
    %162 = vmatprep.subr.bf16.mxu0 0
    %163 = vmatpush1.bf16.msra.mxu0 %v61
    %164 = vmatprep.subr.bf16.mxu0 0
    %165 = vmatpush1.bf16.msra.mxu0 0
    %166 = vmatprep.subr.bf16.mxu0 0
    %167 = vmatpush1.bf16.msra.mxu0 0
    %168 = vmatprep.subr.bf16.mxu0 0
    %169 = vmatpush1.bf16.msra.mxu0 0
    %170 = vmatprep.subr.bf16.mxu0 0
    %171 = vmatpush1.bf16.msra.mxu0 0
    %172 = vmatprep.subr.bf16.mxu0 0
    %173 = vmatpush1.bf16.msra.mxu0 0
    %174 = vmatprep.subr.bf16.mxu0 0
    %175 = vmatpush1.bf16.msra.mxu0 0
    %176 = vmatprep.subr.bf16.mxu0 0
    %177 = vmatpush1.bf16.msra.mxu0 0
    %178 = vmatprep.subr.bf16.mxu0 0
    %179 = vmatpush1.bf16.msra.mxu0 0
    %180 = vmatprep.subr.bf16.mxu0 0
    %181 = vmatpush1.bf16.msra.mxu0 0
    %182 = vmatprep.subr.bf16.mxu0 0
    %183 = vmatpush1.bf16.msra.mxu0 0
    %184 = vmatprep.subr.bf16.mxu0 0
    %185 = vmatpush1.bf16.msra.mxu0 0
    %186 = vmatprep.subr.bf16.mxu0 0
    %187 = vmatpush1.bf16.msra.mxu0 0
    %188 = vmatprep.subr.bf16.mxu0 0
    %189 = vmatpush1.bf16.msra.mxu0 0
    %190 = vmatprep.subr.bf16.mxu0 0
    %191 = vmatpush1.bf16.msra.mxu0 0
    %192 = vmatprep.subr.bf16.mxu0 0
    %193 = vmatpush1.bf16.msra.mxu0 0
    %194 = vmatprep.mubr.bf16.mxu0 0
    %195 = vmatmul.mubr.bf16.gmra.mrb[0].mxu0 %v160
    %v196 = vpop.f32.mrb[0].mxu0
    %v197 = vadd.f32 0.0, %v196
    %v198 = vpop.f32.mrb[0].mxu0
    %v199 = vpop.f32.mrb[0].mxu0
    %v200 = vpop.f32.mrb[0].mxu0
    %201 = vdwg.mxu0
    %v202 = vpack.c.bf16 %v197, %v197
    %v204 = vsel %vm112, %v202, 0
    %206 = vmatprep.subr.bf16.mxu0 0
    %207 = vmatpush1.bf16.msra.mxu0 %v204
    %208 = vmatprep.subr.bf16.mxu0 0
    %209 = vmatpush1.bf16.msra.mxu0 0
    %210 = vmatprep.subr.bf16.mxu0 0
    %211 = vmatpush1.bf16.msra.mxu0 0
    %212 = vmatprep.subr.bf16.mxu0 0
    %213 = vmatpush1.bf16.msra.mxu0 0
    %214 = vmatprep.subr.bf16.mxu0 0
    %215 = vmatpush1.bf16.msra.mxu0 0
    %216 = vmatprep.subr.bf16.mxu0 0
    %217 = vmatpush1.bf16.msra.mxu0 0
    %218 = vmatprep.subr.bf16.mxu0 0
    %219 = vmatpush1.bf16.msra.mxu0 0
    %220 = vmatprep.subr.bf16.mxu0 0
    %221 = vmatpush1.bf16.msra.mxu0 0
    %222 = vmatprep.subr.bf16.mxu0 0
    %223 = vmatpush1.bf16.msra.mxu0 0
    %224 = vmatprep.subr.bf16.mxu0 0
    %225 = vmatpush1.bf16.msra.mxu0 0
    %226 = vmatprep.subr.bf16.mxu0 0
    %227 = vmatpush1.bf16.msra.mxu0 0
    %228 = vmatprep.subr.bf16.mxu0 0
    %229 = vmatpush1.bf16.msra.mxu0 0
    %230 = vmatprep.subr.bf16.mxu0 0
    %231 = vmatpush1.bf16.msra.mxu0 0
    %232 = vmatprep.subr.bf16.mxu0 0
    %233 = vmatpush1.bf16.msra.mxu0 0
    %234 = vmatprep.subr.bf16.mxu0 0
    %235 = vmatpush1.bf16.msra.mxu0 0
    %236 = vmatprep.subr.bf16.mxu0 0
    %237 = vmatpush1.bf16.msra.mxu0 0
    %238 = vmatprep.mubr.bf16.mxu0 0
    %239 = vmatmul.mubr.bf16.gmra.mrb[0].mxu0 %v110
    %v240 = vpop.f32.mrb[0].mxu0
    %v241 = vadd.f32 0.0, %v240
    %v242 = vpop.f32.mrb[0].mxu0
    %v243 = vpop.f32.mrb[0].mxu0
    %v244 = vpop.f32.mrb[0].mxu0
    %245 = vdwg.mxu0
    %v246 = vmax.f32 %v241, 0.0
    %v247 = vpack.c.bf16 %v246, %v246
    %v249 = vsel %vm34, %v247, 0
    %v252 = vsel %vm112, %v63, 0
    %254 = vmatprep.subr.bf16.mxu0 0
    %255 = vmatpush1.bf16.msra.mxu0 %v252
    %256 = vmatprep.subr.bf16.mxu0 0
    %257 = vmatpush1.bf16.msra.mxu0 0
    %258 = vmatprep.subr.bf16.mxu0 0
    %259 = vmatpush1.bf16.msra.mxu0 0
    %260 = vmatprep.subr.bf16.mxu0 0
    %261 = vmatpush1.bf16.msra.mxu0 0
    %262 = vmatprep.subr.bf16.mxu0 0
    %263 = vmatpush1.bf16.msra.mxu0 0
    %264 = vmatprep.subr.bf16.mxu0 0
    %265 = vmatpush1.bf16.msra.mxu0 0
    %266 = vmatprep.subr.bf16.mxu0 0
    %267 = vmatpush1.bf16.msra.mxu0 0
    %268 = vmatprep.subr.bf16.mxu0 0
    %269 = vmatpush1.bf16.msra.mxu0 0
    %270 = vmatprep.subr.bf16.mxu0 0
    %271 = vmatpush1.bf16.msra.mxu0 0
    %272 = vmatprep.subr.bf16.mxu0 0
    %273 = vmatpush1.bf16.msra.mxu0 0
    %274 = vmatprep.subr.bf16.mxu0 0
    %275 = vmatpush1.bf16.msra.mxu0 0
    %276 = vmatprep.subr.bf16.mxu0 0
    %277 = vmatpush1.bf16.msra.mxu0 0
    %278 = vmatprep.subr.bf16.mxu0 0
    %279 = vmatpush1.bf16.msra.mxu0 0
    %280 = vmatprep.subr.bf16.mxu0 0
    %281 = vmatpush1.bf16.msra.mxu0 0
    %282 = vmatprep.subr.bf16.mxu0 0
    %283 = vmatpush1.bf16.msra.mxu0 0
    %284 = vmatprep.subr.bf16.mxu0 0
    %285 = vmatpush1.bf16.msra.mxu0 0
    %286 = vmatprep.mubr.bf16.mxu0 0
    %287 = vmatmul.mubr.bf16.gmra.mrb[0].mxu0 %v249
    %v288 = vpop.f32.mrb[0].mxu0
    %v289 = vadd.f32 0.0, %v288
    %v290 = vpop.f32.mrb[0].mxu0
    %v291 = vpop.f32.mrb[0].mxu0
    %v292 = vpop.f32.mrb[0].mxu0
    %293 = vdwg.mxu0
    %v294 = vpack.c.bf16 %v289, %v289
    %v296 = vsel %vm112, %v294, 0
    %298 = vmatprep.subr.bf16.mxu0 0
    %299 = vmatpush1.bf16.msra.mxu0 %v296
    %300 = vmatprep.subr.bf16.mxu0 0
    %301 = vmatpush1.bf16.msra.mxu0 0
    %302 = vmatprep.subr.bf16.mxu0 0
    %303 = vmatpush1.bf16.msra.mxu0 0
    %304 = vmatprep.subr.bf16.mxu0 0
    %305 = vmatpush1.bf16.msra.mxu0 0
    %306 = vmatprep.subr.bf16.mxu0 0
    %307 = vmatpush1.bf16.msra.mxu0 0
    %308 = vmatprep.subr.bf16.mxu0 0
    %309 = vmatpush1.bf16.msra.mxu0 0
    %310 = vmatprep.subr.bf16.mxu0 0
    %311 = vmatpush1.bf16.msra.mxu0 0
    %312 = vmatprep.subr.bf16.mxu0 0
    %313 = vmatpush1.bf16.msra.mxu0 0
    %314 = vmatprep.subr.bf16.mxu0 0
    %315 = vmatpush1.bf16.msra.mxu0 0
    %316 = vmatprep.subr.bf16.mxu0 0
    %317 = vmatpush1.bf16.msra.mxu0 0
    %318 = vmatprep.subr.bf16.mxu0 0
    %319 = vmatpush1.bf16.msra.mxu0 0
    %320 = vmatprep.subr.bf16.mxu0 0
    %321 = vmatpush1.bf16.msra.mxu0 0
    %322 = vmatprep.subr.bf16.mxu0 0
    %323 = vmatpush1.bf16.msra.mxu0 0
    %324 = vmatprep.subr.bf16.mxu0 0
    %325 = vmatpush1.bf16.msra.mxu0 0
    %326 = vmatprep.subr.bf16.mxu0 0
    %327 = vmatpush1.bf16.msra.mxu0 0
    %328 = vmatprep.subr.bf16.mxu0 0
    %329 = vmatpush1.bf16.msra.mxu0 0
    %330 = vmatprep.mubr.bf16.mxu0 0
    %331 = vmatmul.mubr.bf16.gmra.mrb[0].mxu0 %v110
    %v332 = vpop.f32.mrb[0].mxu0
    %v333 = vadd.f32 0.0, %v332
    %v334 = vpop.f32.mrb[0].mxu0
    %v335 = vpop.f32.mrb[0].mxu0
    %v336 = vpop.f32.mrb[0].mxu0
    %337 = vdwg.mxu0
    %338 = vst.msk [vmem:[#allocation2] sm:$0xff] %vm34, %v333
    %339 = vst.msk [vmem:[#allocation4] sm:$0xff] %vm34, %v49
    // Predicated region
    $region22: #{tpu_custom_call.1} parent=1 // pred_check
      _
    $region23: #{tpu_custom_call.1} parent=1 // pred_check_branch
      %341 = sbr.rel (0) target = $region25
    $region24: #{tpu_custom_call.1} parent=1 // pred_region
      %s343 = ssub.s32 128, 128
      %344 = vsyncadd [#allocation3], %s343
      %s346 = sshll.u32 [#allocation2], 4
      %s347 = int_to_ptr.vmem [resolvable:$true] %s346
      %349 = dma.vmem_to_hbm [thread:$0]  %s347, 128, %s5, [#allocation3]
    $region25: #{tpu_custom_call.1} parent=1 // pred_fallthru
      _
    // Predicated region
    $region26: #{tpu_custom_call.1} parent=1 // pred_check
      _
    $region27: #{tpu_custom_call.1} parent=1 // pred_check_branch
      %351 = sbr.rel (0) target = $region29
    $region28: #{tpu_custom_call.1} parent=1 // pred_region
      %s353 = ssub.s32 128, 128
      %354 = vsyncadd [#allocation5], %s353
      %s356 = sshll.u32 [#allocation4], 4
      %s357 = int_to_ptr.vmem [resolvable:$true] %s356
      %359 = dma.vmem_to_hbm [thread:$0]  %s357, 128, %s6, [#allocation5]
    $region29: #{tpu_custom_call.1} parent=1 // pred_fallthru
      _
    // Predicated region
    $region30: #{tpu_custom_call.1} parent=1 // pred_check
      _
    $region31: #{tpu_custom_call.1} parent=1 // pred_check_branch
      %361 = sbr.rel (0) target = $region33
    $region32: #{tpu_custom_call.1} parent=1 // pred_region
      %362 = dma.done [#allocation3], 128
    $region33: #{tpu_custom_call.1} parent=1 // pred_fallthru
      _
    // Predicated region
    $region34: #{tpu_custom_call.1} parent=1 // pred_check
      _
    $region35: #{tpu_custom_call.1} parent=1 // pred_check_branch
      %364 = sbr.rel (0) target = $region37
    $region36: #{tpu_custom_call.1} parent=1 // pred_region
      %365 = dma.done [#allocation5], 128
    $region37: #{tpu_custom_call.1} parent=1 // pred_fallthru
      _
    %366 = vsyncpa [#allocation3], 1
    %367 = vsyncpa [#allocation5], 1

</llo_original>
